<compile_context>
chip_gen: v6e
topology: v6e:2x2x1
jax: 0.10.0
libtpu: 0.0.40
codegen_flags: <defaults>
</compile_context>

<pallas_src>
import math

import jax
import jax.numpy as jnp
from jax.experimental import pallas as pl
from jax.experimental.pallas import tpu as pltpu


def _conv1d_relu_kernel(x_ref, w_ref, b_ref, o_ref, xp_ref, cols_ref):
    """Single grid step, whole batch at once.

    x_ref:    (B, L, C)          raw (unpadded) input, time on sublanes
    w_ref:    (K*C_in, C_out)    im2col weights, rows ordered tap-major (k, c_in)
    b_ref:    (1, C_out)         bias
    o_ref:    (B, L, C_out)      output
    xp_ref:   (B, L + 2*pad, C)  VMEM scratch: zero-padded input
    cols_ref: (B*L, K*C_in)      VMEM scratch: im2col matrix
    """
    B, L, C = o_ref.shape
    Lp = xp_ref.shape[1]
    pad = (Lp - L) // 2
    K = cols_ref.shape[1] // C

    # In-kernel zero padding (replaces ConstantPad1d / wrapper-side jnp.pad).
    xp_ref[...] = jnp.zeros_like(xp_ref)
    xp_ref[:, pad:pad + L, :] = x_ref[...]

    # im2col with batch folded into rows:
    #   cols[b*L + t, k*C + ci] = xp[b, t + k, ci]
    # B and K are tiny and static -> fully unrolled, all slices static.
    for b in range(B):
        for k in range(K):
            cols_ref[b * L:(b + 1) * L, k * C:(k + 1) * C] = xp_ref[b, k:k + L, :]

    # Whole convolution as ONE MXU matmul with f32 accumulation.
    acc = jnp.dot(cols_ref[...], w_ref[...], preferred_element_type=jnp.float32)
    # Bias added once to the final accumulator, then ReLU.
    acc = jnp.maximum(acc + b_ref[...], 0.0)

    # (B*L, C) rows -> (B, L, C) output (no value reshapes, plain block stores).
    for b in range(B):
        o_ref[b] = acc[b * L:(b + 1) * L, :].astype(o_ref.dtype)


def conv_layer_forward(x, weight, bias, kernel_size):
    """x: (B, L, C); weight: (C_out, C_in, K) [PyTorch Conv1d layout]; bias: (C_out,)."""
    B, L, C = x.shape
    K = kernel_size
    if K % 2 != 1:
        # ConstantPad1d((K-1)//2) + Conv1d only preserves the window length for odd K.
        raise ValueError("kernel_size must be odd to preserve the sequence length")
    pad = (K - 1) // 2

    # Tap-major im2col weight layout: w_flat[k*C + ci, co] = weight[co, ci, k]
    # (reproduces PyTorch Conv1d cross-correlation). Tiny one-time transform.
    w_flat = jnp.transpose(weight, (2, 1, 0)).reshape(K * C, C)
    b_2d = bias.reshape(1, C)

    return pl.pallas_call(
        _conv1d_relu_kernel,
        out_shape=jax.ShapeDtypeStruct((B, L, C), x.dtype),
        # Single grid step: the whole problem is a few KB, so per-step pipeline
        # overhead would dominate any finer grid.  At realistic sizes, tile L
        # across a leading "parallel" axis (with a K-1 halo) for v7x's 2 TCs
        # and its 64 MiB VMEM, and set vmem_limit_bytes explicitly.
        grid=(1,),
        in_specs=[
            pl.BlockSpec((B, L, C), lambda i: (0, 0, 0)),   # x (unpadded)
            pl.BlockSpec((K * C, C), lambda i: (0, 0)),     # im2col weights
            pl.BlockSpec((1, C), lambda i: (0, 0)),         # bias
        ],
        out_specs=pl.BlockSpec((B, L, C), lambda i: (0, 0, 0)),
        scratch_shapes=[
            pltpu.VMEM((B, L + 2 * pad, C), x.dtype),       # zero-padded x
            pltpu.VMEM((B * L, K * C), x.dtype),            # im2col matrix
        ],
        compiler_params=pltpu.CompilerParams(
            dimension_semantics=("arbitrary",),
        ),
    )(x, w_flat, b_2d)


if __name__ == "__main__":
    # Shapes consistent with the module: batch=2, window_size=16, n_features=4, K=7.
    B, L, C, K = 2, 16, 4, 7

    key = jax.random.PRNGKey(0)
    kx, kw, kb = jax.random.split(key, 3)

    x = jax.random.normal(kx, (B, L, C), dtype=jnp.float32)

    # Deterministic Conv1d-style init: U(-sqrt(1/(C_in*K)), +sqrt(1/(C_in*K)))
    bound = 1.0 / math.sqrt(C * K)
    weight = jax.random.uniform(kw, (C, C, K), dtype=jnp.float32,
                                minval=-bound, maxval=bound)
    bias = jax.random.uniform(kb, (C,), dtype=jnp.float32,
                              minval=-bound, maxval=bound)

    out = conv_layer_forward(x, weight, bias, K)
    out = jax.block_until_ready(out)
    assert out.shape == (B, L, C), out.shape

    # Pure-JAX reference of the PyTorch forward (permute -> pad -> conv1d -> relu -> permute).
    pad = (K - 1) // 2
    xp = jnp.pad(x, ((0, 0), (pad, pad), (0, 0)))
    taps = jnp.stack([xp[:, k:k + L, :] for k in range(K)], axis=1)   # (B, K, L, C_in)
    ref = jnp.einsum("bkti,oik->bto", taps, weight) + bias
    ref = jnp.maximum(ref, 0.0)

    err = float(jnp.max(jnp.abs(out - ref)))
    assert jnp.allclose(out, ref, atol=1e-5, rtol=1e-5), f"max abs err {err}"
    print("KERNEL_OK")
</pallas_src>

<mosaic_0001>
module attributes {stable_mosaic.version = 11 : i64} {
  func.func @_conv1d_relu_kernel(%arg0: i32, %arg1: memref<2x16x4xf32, #tpu.memory_space<vmem>>, %arg2: memref<28x4xf32, #tpu.memory_space<vmem>>, %arg3: memref<1x4xf32, #tpu.memory_space<vmem>>, %arg4: memref<2x16x4xf32, #tpu.memory_space<vmem>>, %arg5: memref<2x22x4xf32, #tpu.memory_space<vmem>>, %arg6: memref<32x28xf32, #tpu.memory_space<vmem>>) attributes {dimension_semantics = [#tpu.dimension_semantics<arbitrary>], iteration_bounds = array<i64: 1>, scalar_prefetch = 0 : i64, scratch_operands = 2 : i64, tpu.core_type = #tpu.core_type<tc>, window_params = [{pipeline_mode = #tpu.pipeline_mode<synchronous>, transform_indices = @transform_0, window_bounds = array<i64: 2, 16, 4>}, {pipeline_mode = #tpu.pipeline_mode<synchronous>, transform_indices = @transform_1, window_bounds = array<i64: 28, 4>}, {pipeline_mode = #tpu.pipeline_mode<synchronous>, transform_indices = @transform_2, window_bounds = array<i64: 1, 4>}, {pipeline_mode = #tpu.pipeline_mode<synchronous>, transform_indices = @transform_3, window_bounds = array<i64: 2, 16, 4>}]} {
    %cst = arith.constant 0.000000e+00 : f32
    %0 = vector.broadcast %cst : f32 to vector<2x22x4xf32>
    %c0 = arith.constant 0 : index
    %c0_0 = arith.constant 0 : index
    %c0_1 = arith.constant 0 : index
    %1 = vector.load %arg5[%c0, %c0_0, %c0_1] : memref<2x22x4xf32, #tpu.memory_space<vmem>>, vector<2x22x4xf32>
    tpu.vector_store %arg5[%c0, %c0_0, %c0_1], %0 {strides = array<i32>} : memref<2x22x4xf32, #tpu.memory_space<vmem>>, vector<2x22x4xf32>,
    %c0_2 = arith.constant 0 : index
    %c0_3 = arith.constant 0 : index
    %c0_4 = arith.constant 0 : index
    %2 = vector.load %arg1[%c0_2, %c0_3, %c0_4] : memref<2x16x4xf32, #tpu.memory_space<vmem>>, vector<2x16x4xf32>
    %c0_5 = arith.constant 0 : index
    %c3 = arith.constant 3 : index
    %c0_6 = arith.constant 0 : index
    %3 = vector.load %arg5[%c0_5, %c3, %c0_6] : memref<2x22x4xf32, #tpu.memory_space<vmem>>, vector<2x16x4xf32>
    tpu.vector_store %arg5[%c0_5, %c3, %c0_6], %2 {strides = array<i32>} : memref<2x22x4xf32, #tpu.memory_space<vmem>>, vector<2x16x4xf32>,
    %c0_7 = arith.constant 0 : index
    %c0_8 = arith.constant 0 : index
    %c0_9 = arith.constant 0 : index
    %4 = vector.load %arg5[%c0_7, %c0_8, %c0_9] : memref<2x22x4xf32, #tpu.memory_space<vmem>>, vector<1x16x4xf32>
    %5 = vector.shape_cast %4 : vector<1x16x4xf32> to vector<16x4xf32>
    %c0_10 = arith.constant 0 : index
    %c0_11 = arith.constant 0 : index
    %6 = vector.load %arg6[%c0_10, %c0_11] : memref<32x28xf32, #tpu.memory_space<vmem>>, vector<16x4xf32>
    tpu.vector_store %arg6[%c0_10, %c0_11], %5 {strides = array<i32>} : memref<32x28xf32, #tpu.memory_space<vmem>>, vector<16x4xf32>,
    %c0_12 = arith.constant 0 : index
    %c1 = arith.constant 1 : index
    %c0_13 = arith.constant 0 : index
    %7 = vector.load %arg5[%c0_12, %c1, %c0_13] : memref<2x22x4xf32, #tpu.memory_space<vmem>>, vector<1x16x4xf32>
    %8 = vector.shape_cast %7 : vector<1x16x4xf32> to vector<16x4xf32>
    %c0_14 = arith.constant 0 : index
    %c4 = arith.constant 4 : index
    %9 = vector.load %arg6[%c0_14, %c4] : memref<32x28xf32, #tpu.memory_space<vmem>>, vector<16x4xf32>
    tpu.vector_store %arg6[%c0_14, %c4], %8 {strides = array<i32>} : memref<32x28xf32, #tpu.memory_space<vmem>>, vector<16x4xf32>,
    %c0_15 = arith.constant 0 : index
    %c2 = arith.constant 2 : index
    %c0_16 = arith.constant 0 : index
    %10 = vector.load %arg5[%c0_15, %c2, %c0_16] : memref<2x22x4xf32, #tpu.memory_space<vmem>>, vector<1x16x4xf32>
    %11 = vector.shape_cast %10 : vector<1x16x4xf32> to vector<16x4xf32>
    %c0_17 = arith.constant 0 : index
    %c8 = arith.constant 8 : index
    %12 = vector.load %arg6[%c0_17, %c8] : memref<32x28xf32, #tpu.memory_space<vmem>>, vector<16x4xf32>
    tpu.vector_store %arg6[%c0_17, %c8], %11 {strides = array<i32>} : memref<32x28xf32, #tpu.memory_space<vmem>>, vector<16x4xf32>,
    %c0_18 = arith.constant 0 : index
    %c3_19 = arith.constant 3 : index
    %c0_20 = arith.constant 0 : index
    %13 = vector.load %arg5[%c0_18, %c3_19, %c0_20] : memref<2x22x4xf32, #tpu.memory_space<vmem>>, vector<1x16x4xf32>
    %14 = vector.shape_cast %13 : vector<1x16x4xf32> to vector<16x4xf32>
    %c0_21 = arith.constant 0 : index
    %c12 = arith.constant 12 : index
    %15 = vector.load %arg6[%c0_21, %c12] : memref<32x28xf32, #tpu.memory_space<vmem>>, vector<16x4xf32>
    tpu.vector_store %arg6[%c0_21, %c12], %14 {strides = array<i32>} : memref<32x28xf32, #tpu.memory_space<vmem>>, vector<16x4xf32>,
    %c0_22 = arith.constant 0 : index
    %c4_23 = arith.constant 4 : index
    %c0_24 = arith.constant 0 : index
    %16 = vector.load %arg5[%c0_22, %c4_23, %c0_24] : memref<2x22x4xf32, #tpu.memory_space<vmem>>, vector<1x16x4xf32>
    %17 = vector.shape_cast %16 : vector<1x16x4xf32> to vector<16x4xf32>
    %c0_25 = arith.constant 0 : index
    %c16 = arith.constant 16 : index
    %18 = vector.load %arg6[%c0_25, %c16] : memref<32x28xf32, #tpu.memory_space<vmem>>, vector<16x4xf32>
    tpu.vector_store %arg6[%c0_25, %c16], %17 {strides = array<i32>} : memref<32x28xf32, #tpu.memory_space<vmem>>, vector<16x4xf32>,
    %c0_26 = arith.constant 0 : index
    %c5 = arith.constant 5 : index
    %c0_27 = arith.constant 0 : index
    %19 = vector.load %arg5[%c0_26, %c5, %c0_27] : memref<2x22x4xf32, #tpu.memory_space<vmem>>, vector<1x16x4xf32>
    %20 = vector.shape_cast %19 : vector<1x16x4xf32> to vector<16x4xf32>
    %c0_28 = arith.constant 0 : index
    %c20 = arith.constant 20 : index
    %21 = vector.load %arg6[%c0_28, %c20] : memref<32x28xf32, #tpu.memory_space<vmem>>, vector<16x4xf32>
    tpu.vector_store %arg6[%c0_28, %c20], %20 {strides = array<i32>} : memref<32x28xf32, #tpu.memory_space<vmem>>, vector<16x4xf32>,
    %c0_29 = arith.constant 0 : index
    %c6 = arith.constant 6 : index
    %c0_30 = arith.constant 0 : index
    %22 = vector.load %arg5[%c0_29, %c6, %c0_30] : memref<2x22x4xf32, #tpu.memory_space<vmem>>, vector<1x16x4xf32>
    %23 = vector.shape_cast %22 : vector<1x16x4xf32> to vector<16x4xf32>
    %c0_31 = arith.constant 0 : index
    %c24 = arith.constant 24 : index
    %24 = vector.load %arg6[%c0_31, %c24] : memref<32x28xf32, #tpu.memory_space<vmem>>, vector<16x4xf32>
    tpu.vector_store %arg6[%c0_31, %c24], %23 {strides = array<i32>} : memref<32x28xf32, #tpu.memory_space<vmem>>, vector<16x4xf32>,
    %c1_32 = arith.constant 1 : index
    %c0_33 = arith.constant 0 : index
    %c0_34 = arith.constant 0 : index
    %25 = vector.load %arg5[%c1_32, %c0_33, %c0_34] : memref<2x22x4xf32, #tpu.memory_space<vmem>>, vector<1x16x4xf32>
    %26 = vector.shape_cast %25 : vector<1x16x4xf32> to vector<16x4xf32>
    %c16_35 = arith.constant 16 : index
    %c0_36 = arith.constant 0 : index
    %27 = vector.load %arg6[%c16_35, %c0_36] : memref<32x28xf32, #tpu.memory_space<vmem>>, vector<16x4xf32>
    tpu.vector_store %arg6[%c16_35, %c0_36], %26 {strides = array<i32>} : memref<32x28xf32, #tpu.memory_space<vmem>>, vector<16x4xf32>,
    %c1_37 = arith.constant 1 : index
    %c1_38 = arith.constant 1 : index
    %c0_39 = arith.constant 0 : index
    %28 = vector.load %arg5[%c1_37, %c1_38, %c0_39] : memref<2x22x4xf32, #tpu.memory_space<vmem>>, vector<1x16x4xf32>
    %29 = vector.shape_cast %28 : vector<1x16x4xf32> to vector<16x4xf32>
    %c16_40 = arith.constant 16 : index
    %c4_41 = arith.constant 4 : index
    %30 = vector.load %arg6[%c16_40, %c4_41] : memref<32x28xf32, #tpu.memory_space<vmem>>, vector<16x4xf32>
    tpu.vector_store %arg6[%c16_40, %c4_41], %29 {strides = array<i32>} : memref<32x28xf32, #tpu.memory_space<vmem>>, vector<16x4xf32>,
    %c1_42 = arith.constant 1 : index
    %c2_43 = arith.constant 2 : index
    %c0_44 = arith.constant 0 : index
    %31 = vector.load %arg5[%c1_42, %c2_43, %c0_44] : memref<2x22x4xf32, #tpu.memory_space<vmem>>, vector<1x16x4xf32>
    %32 = vector.shape_cast %31 : vector<1x16x4xf32> to vector<16x4xf32>
    %c16_45 = arith.constant 16 : index
    %c8_46 = arith.constant 8 : index
    %33 = vector.load %arg6[%c16_45, %c8_46] : memref<32x28xf32, #tpu.memory_space<vmem>>, vector<16x4xf32>
    tpu.vector_store %arg6[%c16_45, %c8_46], %32 {strides = array<i32>} : memref<32x28xf32, #tpu.memory_space<vmem>>, vector<16x4xf32>,
    %c1_47 = arith.constant 1 : index
    %c3_48 = arith.constant 3 : index
    %c0_49 = arith.constant 0 : index
    %34 = vector.load %arg5[%c1_47, %c3_48, %c0_49] : memref<2x22x4xf32, #tpu.memory_space<vmem>>, vector<1x16x4xf32>
    %35 = vector.shape_cast %34 : vector<1x16x4xf32> to vector<16x4xf32>
    %c16_50 = arith.constant 16 : index
    %c12_51 = arith.constant 12 : index
    %36 = vector.load %arg6[%c16_50, %c12_51] : memref<32x28xf32, #tpu.memory_space<vmem>>, vector<16x4xf32>
    tpu.vector_store %arg6[%c16_50, %c12_51], %35 {strides = array<i32>} : memref<32x28xf32, #tpu.memory_space<vmem>>, vector<16x4xf32>,
    %c1_52 = arith.constant 1 : index
    %c4_53 = arith.constant 4 : index
    %c0_54 = arith.constant 0 : index
    %37 = vector.load %arg5[%c1_52, %c4_53, %c0_54] : memref<2x22x4xf32, #tpu.memory_space<vmem>>, vector<1x16x4xf32>
    %38 = vector.shape_cast %37 : vector<1x16x4xf32> to vector<16x4xf32>
    %c16_55 = arith.constant 16 : index
    %c16_56 = arith.constant 16 : index
    %39 = vector.load %arg6[%c16_55, %c16_56] : memref<32x28xf32, #tpu.memory_space<vmem>>, vector<16x4xf32>
    tpu.vector_store %arg6[%c16_55, %c16_56], %38 {strides = array<i32>} : memref<32x28xf32, #tpu.memory_space<vmem>>, vector<16x4xf32>,
    %c1_57 = arith.constant 1 : index
    %c5_58 = arith.constant 5 : index
    %c0_59 = arith.constant 0 : index
    %40 = vector.load %arg5[%c1_57, %c5_58, %c0_59] : memref<2x22x4xf32, #tpu.memory_space<vmem>>, vector<1x16x4xf32>
    %41 = vector.shape_cast %40 : vector<1x16x4xf32> to vector<16x4xf32>
    %c16_60 = arith.constant 16 : index
    %c20_61 = arith.constant 20 : index
    %42 = vector.load %arg6[%c16_60, %c20_61] : memref<32x28xf32, #tpu.memory_space<vmem>>, vector<16x4xf32>
    tpu.vector_store %arg6[%c16_60, %c20_61], %41 {strides = array<i32>} : memref<32x28xf32, #tpu.memory_space<vmem>>, vector<16x4xf32>,
    %c1_62 = arith.constant 1 : index
    %c6_63 = arith.constant 6 : index
    %c0_64 = arith.constant 0 : index
    %43 = vector.load %arg5[%c1_62, %c6_63, %c0_64] : memref<2x22x4xf32, #tpu.memory_space<vmem>>, vector<1x16x4xf32>
    %44 = vector.shape_cast %43 : vector<1x16x4xf32> to vector<16x4xf32>
    %c16_65 = arith.constant 16 : index
    %c24_66 = arith.constant 24 : index
    %45 = vector.load %arg6[%c16_65, %c24_66] : memref<32x28xf32, #tpu.memory_space<vmem>>, vector<16x4xf32>
    tpu.vector_store %arg6[%c16_65, %c24_66], %44 {strides = array<i32>} : memref<32x28xf32, #tpu.memory_space<vmem>>, vector<16x4xf32>,
    %c0_67 = arith.constant 0 : index
    %c0_68 = arith.constant 0 : index
    %46 = vector.load %arg6[%c0_67, %c0_68] : memref<32x28xf32, #tpu.memory_space<vmem>>, vector<32x28xf32>
    %c0_69 = arith.constant 0 : index
    %c0_70 = arith.constant 0 : index
    %47 = vector.load %arg2[%c0_69, %c0_70] : memref<28x4xf32, #tpu.memory_space<vmem>>, vector<28x4xf32>
    %cst_71 = arith.constant dense<0.000000e+00> : vector<32x4xf32>
    %48 = tpu.matmul %46, %47, %cst_71 {dimension_numbers = #tpu.dot_dimension_numbers<[1], [0], [0], [1], [0, 0, 1, 1], [], []>} : vector<32x28xf32>, vector<28x4xf32>, vector<32x4xf32> -> vector<32x4xf32>
    %c0_72 = arith.constant 0 : index
    %c0_73 = arith.constant 0 : index
    %49 = vector.load %arg3[%c0_72, %c0_73] : memref<1x4xf32, #tpu.memory_space<vmem>>, vector<1x4xf32>
    %50 = vector.broadcast %49 : vector<1x4xf32> to vector<32x4xf32>
    %51 = arith.addf %48, %50 : vector<32x4xf32>
    %cst_74 = arith.constant 0.000000e+00 : f32
    %52 = vector.broadcast %cst_74 : f32 to vector<32x4xf32>
    %53 = arith.maximumf %51, %52 : vector<32x4xf32>
    %54 = vector.extract_strided_slice %53 {offsets = [0, 0], sizes = [16, 4], strides = [1, 1]} : vector<32x4xf32> to vector<16x4xf32>
    %c0_75 = arith.constant 0 : index
    %c0_76 = arith.constant 0 : index
    %c0_77 = arith.constant 0 : index
    %55 = vector.load %arg4[%c0_75, %c0_76, %c0_77] : memref<2x16x4xf32, #tpu.memory_space<vmem>>, vector<1x16x4xf32>
    %56 = vector.shape_cast %55 : vector<1x16x4xf32> to vector<16x4xf32>
    %57 = vector.shape_cast %54 : vector<16x4xf32> to vector<1x16x4xf32>
    tpu.vector_store %arg4[%c0_75, %c0_76, %c0_77], %57 {strides = array<i32>} : memref<2x16x4xf32, #tpu.memory_space<vmem>>, vector<1x16x4xf32>,
    %58 = vector.extract_strided_slice %53 {offsets = [16, 0], sizes = [16, 4], strides = [1, 1]} : vector<32x4xf32> to vector<16x4xf32>
    %c1_78 = arith.constant 1 : index
    %c0_79 = arith.constant 0 : index
    %c0_80 = arith.constant 0 : index
    %59 = vector.load %arg4[%c1_78, %c0_79, %c0_80] : memref<2x16x4xf32, #tpu.memory_space<vmem>>, vector<1x16x4xf32>
    %60 = vector.shape_cast %59 : vector<1x16x4xf32> to vector<16x4xf32>
    %61 = vector.shape_cast %58 : vector<16x4xf32> to vector<1x16x4xf32>
    tpu.vector_store %arg4[%c1_78, %c0_79, %c0_80], %61 {strides = array<i32>} : memref<2x16x4xf32, #tpu.memory_space<vmem>>, vector<1x16x4xf32>,
    return
  }
  func.func @transform_0(%arg0: i32) -> (i32, i32, i32) {
    %c0_i32 = arith.constant 0 : i32
    %c0_i32_0 = arith.constant 0 : i32
    %c0_i32_1 = arith.constant 0 : i32
    %c0_i32_2 = arith.constant 0 : i32
    return %c0_i32, %c0_i32_0, %c0_i32_1 : i32, i32, i32
  }
  func.func @transform_1(%arg0: i32) -> (i32, i32) {
    %c0_i32 = arith.constant 0 : i32
    %c0_i32_0 = arith.constant 0 : i32
    %c0_i32_1 = arith.constant 0 : i32
    return %c0_i32, %c0_i32_0 : i32, i32
  }
  func.func @transform_2(%arg0: i32) -> (i32, i32) {
    %c0_i32 = arith.constant 0 : i32
    %c0_i32_0 = arith.constant 0 : i32
    %c0_i32_1 = arith.constant 0 : i32
    return %c0_i32, %c0_i32_0 : i32, i32
  }
  func.func @transform_3(%arg0: i32) -> (i32, i32, i32) {
    %c0_i32 = arith.constant 0 : i32
    %c0_i32_0 = arith.constant 0 : i32
    %c0_i32_1 = arith.constant 0 : i32
    %c0_i32_2 = arith.constant 0 : i32
    return %c0_i32, %c0_i32_0, %c0_i32_1 : i32, i32, i32
  }
}

</mosaic_0001>

<llo_original>
// kernel: tpu_custom_call.1
$region0: #{tpu_custom_call.1}
  #allocation0 [shape = 'u32[]', space=smem, size = 0x4, offset = 0x4, fixed_abs, tag = 'smem constant byte address 0x4 - core index']
  #allocation1 [shape = 'u32[144,128]{1,0:T(1,128)}', space=vmem, size = 0x12000, scoped, tag = 'internal scratch']
  #allocation2 [shape = 'f32[2,22,4]{2,1,0:T(8,128)}', space=vmem, size = 0x6000, scoped, tag = 'scratch operand']
  #allocation3 [shape = 'f32[32,28]{1,0:T(8,128)}', space=vmem, size = 0x4000, scoped, tag = 'scratch operand']
  %s0 = inlined_call_operand.vmem [shape: f32[2,16,4], index: 0, kind: input, shape index: {}]
  %s1 = inlined_call_operand.vmem [shape: f32[28,4], index: 1, kind: input, shape index: {}]
  %s2 = inlined_call_operand.vmem [shape: f32[1,4], index: 2, kind: input, shape index: {}]
  %s3 = inlined_call_operand.vmem [shape: f32[2,16,4], index: 3, kind: output, shape index: {}]
  %s4 = sld [smem:[#allocation0]]
  $region22: #{tpu_custom_call.1} parent=0
    _
  %s6 = ssub.s32 1, %s4
  %s7 = scalar_select 0, %s6, %s4
  // Predicated region
  $region2: #{tpu_custom_call.1} parent=0 // pred_check
    _
  $region3: #{tpu_custom_call.1} parent=0 // pred_check_branch
    %9 = sbr.rel (0) target = $region5
  $region4: #{tpu_custom_call.1} parent=0 // pred_region
    _
  $region5: #{tpu_custom_call.1} parent=0 // pred_fallthru
    _
  // Predicated region
  $region6: #{tpu_custom_call.1} parent=0 // pred_check
    _
  $region7: #{tpu_custom_call.1} parent=0 // pred_check_branch
    %11 = sbr.rel (0) target = $region9
  $region8: #{tpu_custom_call.1} parent=0 // pred_region
    _
  $region9: #{tpu_custom_call.1} parent=0 // pred_fallthru
    _
  // Predicated region
  $region10: #{tpu_custom_call.1} parent=0 // pred_check
    _
  $region11: #{tpu_custom_call.1} parent=0 // pred_check_branch
    %13 = sbr.rel (0) target = $region13
  $region12: #{tpu_custom_call.1} parent=0 // pred_region
    _
  $region13: #{tpu_custom_call.1} parent=0 // pred_fallthru
    _
  %vm14 = vcmask 31744
  %15 = vst.msk [vmem:[#allocation2] sm:$0xff] %vm14, 0.0
  %16 = vst.msk [vmem:[#allocation2 + $0x8] sm:$0xff] %vm14, 0.0
  %vm17 = vcmask 29696
  %18 = vst.msk [vmem:[#allocation2 + $0x10] sm:$0x3f] %vm17, 0.0
  %19 = vst.msk [vmem:[#allocation2 + $0x18] sm:$0xff] %vm14, 0.0
  %20 = vst.msk [vmem:[#allocation2 + $0x20] sm:$0xff] %vm14, 0.0
  %21 = vst.msk [vmem:[#allocation2 + $0x28] sm:$0x3f] %vm17, 0.0
  %v22 = vld [vmem:[%s0] sm:$0xff]
  %v23 = vld [vmem:[%s0 + $0x8] sm:$0xff]
  %v24 = vld [vmem:[%s0 + $0x10] sm:$0xff]
  %v25 = vld [vmem:[%s0 + $0x18] sm:$0xff]
  %26 = vst.msk [vmem:[#allocation2 + $0x3] sm:$0xff] %vm14, %v22
  %27 = vst.msk [vmem:[#allocation2 + $0xb] sm:$0xff] %vm14, %v23
  %28 = vst.msk [vmem:[#allocation2 + $0x1b] sm:$0xff] %vm14, %v24
  %29 = vst.msk [vmem:[#allocation2 + $0x23] sm:$0xff] %vm14, %v25
  %v30 = vld [vmem:[#allocation2] sm:$0xff]
  %v31 = vld [vmem:[#allocation2 + $0x8] sm:$0xff]
  %32 = vst.msk [vmem:[#allocation3] sm:$0xff] %vm14, %v30
  %33 = vst.msk [vmem:[#allocation3 + $0x8] sm:$0xff] %vm14, %v31
  %v34 = vld [vmem:[#allocation2 + $0x1] sm:$0xff]
  %v35 = vld [vmem:[#allocation2 + $0x9] sm:$0xff]
  %38 = vrot.lane.b32.xlu0 %v34, 4
  %v39 = vpop.permute.xlu0 %38
  %40 = vrot.lane.b32.xlu0 %v35, 4
  %v41 = vpop.permute.xlu0 %40
  %vm44 = vcmask 64544
  %45 = vst.msk [vmem:[#allocation3] sm:$0xff] %vm44, %v39
  %46 = vst.msk [vmem:[#allocation3 + $0x8] sm:$0xff] %vm44, %v41
  %v47 = vld [vmem:[#allocation2 + $0x2] sm:$0xff]
  %v48 = vld [vmem:[#allocation2 + $0xa] sm:$0xff]
  %51 = vrot.lane.b32.xlu0 %v47, 8
  %v52 = vpop.permute.xlu0 %51
  %53 = vrot.lane.b32.xlu0 %v48, 8
  %v54 = vpop.permute.xlu0 %53
  %vm57 = vcmask 97344
  %58 = vst.msk [vmem:[#allocation3] sm:$0xff] %vm57, %v52
  %59 = vst.msk [vmem:[#allocation3 + $0x8] sm:$0xff] %vm57, %v54
  %v60 = vld [vmem:[#allocation2 + $0x3] sm:$0xff]
  %v61 = vld [vmem:[#allocation2 + $0xb] sm:$0xff]
  %64 = vrot.lane.b32.xlu0 %v60, 12
  %v65 = vpop.permute.xlu0 %64
  %66 = vrot.lane.b32.xlu0 %v61, 12
  %v67 = vpop.permute.xlu0 %66
  %vm70 = vcmask 130144
  %71 = vst.msk [vmem:[#allocation3] sm:$0xff] %vm70, %v65
  %72 = vst.msk [vmem:[#allocation3 + $0x8] sm:$0xff] %vm70, %v67
  %v73 = vld [vmem:[#allocation2 + $0x4] sm:$0xff]
  %v74 = vld [vmem:[#allocation2 + $0xc] sm:$0xff]
  %77 = vrot.lane.b32.xlu0 %v73, 16
  %v78 = vpop.permute.xlu0 %77
  %79 = vrot.lane.b32.xlu0 %v74, 16
  %v80 = vpop.permute.xlu0 %79
  %vm83 = vcmask 162944
  %84 = vst.msk [vmem:[#allocation3] sm:$0xff] %vm83, %v78
  %85 = vst.msk [vmem:[#allocation3 + $0x8] sm:$0xff] %vm83, %v80
  %v86 = vld [vmem:[#allocation2 + $0x5] sm:$0xff]
  %v87 = vld [vmem:[#allocation2 + $0xd] sm:$0xff]
  %90 = vrot.lane.b32.xlu0 %v86, 20
  %v91 = vpop.permute.xlu0 %90
  %92 = vrot.lane.b32.xlu0 %v87, 20
  %v93 = vpop.permute.xlu0 %92
  %vm96 = vcmask 195744
  %97 = vst.msk [vmem:[#allocation3] sm:$0xff] %vm96, %v91
  %98 = vst.msk [vmem:[#allocation3 + $0x8] sm:$0xff] %vm96, %v93
  %v99 = vld [vmem:[#allocation2 + $0x6] sm:$0xff]
  %v100 = vld [vmem:[#allocation2 + $0xe] sm:$0xff]
  %103 = vrot.lane.b32.xlu0 %v99, 24
  %v104 = vpop.permute.xlu0 %103
  %105 = vrot.lane.b32.xlu0 %v100, 24
  %v106 = vpop.permute.xlu0 %105
  %vm109 = vcmask 228544
  %110 = vst.msk [vmem:[#allocation3] sm:$0xff] %vm109, %v104
  %111 = vst.msk [vmem:[#allocation3 + $0x8] sm:$0xff] %vm109, %v106
  %s112 = scalar_lea.vmem [#allocation2], 24
  %v113 = vld [vmem:[%s112] sm:$0xff]
  %v114 = vld [vmem:[%s112 + $0x8] sm:$0xff]
  %115 = vst.msk [vmem:[#allocation3 + $0x10] sm:$0xff] %vm14, %v113
  %116 = vst.msk [vmem:[#allocation3 + $0x18] sm:$0xff] %vm14, %v114
  %v117 = vld [vmem:[%s112 + $0x1] sm:$0xff]
  %v118 = vld [vmem:[%s112 + $0x9] sm:$0xff]
  %121 = vrot.lane.b32.xlu0 %v117, 4
  %v122 = vpop.permute.xlu0 %121
  %123 = vrot.lane.b32.xlu0 %v118, 4
  %v124 = vpop.permute.xlu0 %123
  %127 = vst.msk [vmem:[#allocation3 + $0x10] sm:$0xff] %vm44, %v122
  %128 = vst.msk [vmem:[#allocation3 + $0x18] sm:$0xff] %vm44, %v124
  %v129 = vld [vmem:[%s112 + $0x2] sm:$0xff]
  %v130 = vld [vmem:[%s112 + $0xa] sm:$0xff]
  %133 = vrot.lane.b32.xlu0 %v129, 8
  %v134 = vpop.permute.xlu0 %133
  %135 = vrot.lane.b32.xlu0 %v130, 8
  %v136 = vpop.permute.xlu0 %135
  %139 = vst.msk [vmem:[#allocation3 + $0x10] sm:$0xff] %vm57, %v134
  %140 = vst.msk [vmem:[#allocation3 + $0x18] sm:$0xff] %vm57, %v136
  %v141 = vld [vmem:[%s112 + $0x3] sm:$0xff]
  %v142 = vld [vmem:[%s112 + $0xb] sm:$0xff]
  %145 = vrot.lane.b32.xlu0 %v141, 12
  %v146 = vpop.permute.xlu0 %145
  %147 = vrot.lane.b32.xlu0 %v142, 12
  %v148 = vpop.permute.xlu0 %147
  %151 = vst.msk [vmem:[#allocation3 + $0x10] sm:$0xff] %vm70, %v146
  %152 = vst.msk [vmem:[#allocation3 + $0x18] sm:$0xff] %vm70, %v148
  %v153 = vld [vmem:[%s112 + $0x4] sm:$0xff]
  %v154 = vld [vmem:[%s112 + $0xc] sm:$0xff]
  %157 = vrot.lane.b32.xlu0 %v153, 16
  %v158 = vpop.permute.xlu0 %157
  %159 = vrot.lane.b32.xlu0 %v154, 16
  %v160 = vpop.permute.xlu0 %159
  %163 = vst.msk [vmem:[#allocation3 + $0x10] sm:$0xff] %vm83, %v158
  %164 = vst.msk [vmem:[#allocation3 + $0x18] sm:$0xff] %vm83, %v160
  %v165 = vld [vmem:[%s112 + $0x5] sm:$0xff]
  %v166 = vld [vmem:[%s112 + $0xd] sm:$0xff]
  %169 = vrot.lane.b32.xlu0 %v165, 20
  %v170 = vpop.permute.xlu0 %169
  %171 = vrot.lane.b32.xlu0 %v166, 20
  %v172 = vpop.permute.xlu0 %171
  %175 = vst.msk [vmem:[#allocation3 + $0x10] sm:$0xff] %vm96, %v170
  %176 = vst.msk [vmem:[#allocation3 + $0x18] sm:$0xff] %vm96, %v172
  %v177 = vld [vmem:[%s112 + $0x6] sm:$0xff]
  %v178 = vld [vmem:[%s112 + $0xe] sm:$0xff]
  %181 = vrot.lane.b32.xlu0 %v177, 24
  %v182 = vpop.permute.xlu0 %181
  %183 = vrot.lane.b32.xlu0 %v178, 24
  %v184 = vpop.permute.xlu0 %183
  %187 = vst.msk [vmem:[#allocation3 + $0x10] sm:$0xff] %vm109, %v182
  %188 = vst.msk [vmem:[#allocation3 + $0x18] sm:$0xff] %vm109, %v184
  %v189 = vld [vmem:[#allocation3] sm:$0xff]
  %v190 = vld [vmem:[#allocation3 + $0x8] sm:$0xff]
  %v191 = vld [vmem:[#allocation3 + $0x10] sm:$0xff]
  %v192 = vld [vmem:[#allocation3 + $0x18] sm:$0xff]
  %v193 = vld [vmem:[%s1] sm:$0xff]
  %v194 = vld [vmem:[%s1 + $0x8] sm:$0xff]
  %v195 = vld [vmem:[%s1 + $0x10] sm:$0xff]
  %v196 = vld [vmem:[%s1 + $0x18] sm:$0xf]
  %v197 = vld [vmem:[%s2] sm:$0x1]
  %v199 = vlaneseq
  %v200 = vshrl.u32 %v199, 7
  %v201 = vsub.s32 0, %v200
  %v202 = vrot.slane %v197, %v201
  %vm204 = vcmask 228352
  %v206 = vsel %vm204, %v189, 0
  %v209 = vsel %vm204, %v190, 0
  %v212 = vsel %vm204, %v191, 0
  %v215 = vsel %vm204, %v192, 0
  %vm217 = vcmask 1043456
  %v219 = vsel %vm217, %v196, 0
  %221 = vmatprep.subr.mxu0 0.0
  %222 = vmatpush1.msra.mxu0 0.0
  %223 = vmatprep.subr.mxu0 0.0
  %224 = vmatpush1.msra.mxu0 0.0
  %225 = vmatprep.subr.mxu0 0.0
  %226 = vmatpush1.msra.mxu0 0.0
  %227 = vmatprep.subr.mxu0 0.0
  %228 = vmatpush1.msra.mxu0 0.0
  %229 = vmatprep.subr.mxu0 0.0
  %230 = vmatpush1.msra.mxu0 0.0
  %231 = vmatprep.subr.mxu0 0.0
  %232 = vmatpush1.msra.mxu0 0.0
  %233 = vmatprep.subr.mxu0 0.0
  %234 = vmatpush1.msra.mxu0 0.0
  %235 = vmatprep.subr.mxu0 0.0
  %236 = vmatpush1.msra.mxu0 0.0
  %237 = vmatprep.subr.mxu0 0.0
  %238 = vmatpush1.msra.mxu0 0.0
  %239 = vmatprep.subr.mxu0 0.0
  %240 = vmatpush1.msra.mxu0 0.0
  %241 = vmatprep.subr.mxu0 0.0
  %242 = vmatpush1.msra.mxu0 0.0
  %243 = vmatprep.subr.mxu0 0.0
  %244 = vmatpush1.msra.mxu0 0.0
  %245 = vmatprep.subr.mxu0 0.0
  %246 = vmatpush1.msra.mxu0 %v219
  %247 = vmatprep.subr.mxu0 0.0
  %248 = vmatpush1.msra.mxu0 %v195
  %249 = vmatprep.subr.mxu0 0.0
  %250 = vmatpush1.msra.mxu0 %v194
  %251 = vmatprep.subr.mxu0 0.0
  %252 = vmatpush1.msra.mxu0 %v193
  %253 = vmatprep.subr.mxu0 0.0
  %254 = vmatpush2.msra.mxu0 0.0
  %255 = vmatprep.subr.mxu0 0.0
  %256 = vmatpush2.msra.mxu0 0.0
  %257 = vmatprep.subr.mxu0 0.0
  %258 = vmatpush2.msra.mxu0 0.0
  %259 = vmatprep.subr.mxu0 0.0
  %260 = vmatpush2.msra.mxu0 0.0
  %261 = vmatprep.subr.mxu0 0.0
  %262 = vmatpush2.msra.mxu0 0.0
  %263 = vmatprep.subr.mxu0 0.0
  %264 = vmatpush2.msra.mxu0 0.0
  %265 = vmatprep.subr.mxu0 0.0
  %266 = vmatpush2.msra.mxu0 0.0
  %267 = vmatprep.subr.mxu0 0.0
  %268 = vmatpush2.msra.mxu0 0.0
  %269 = vmatprep.subr.mxu0 0.0
  %270 = vmatpush2.msra.mxu0 0.0
  %271 = vmatprep.subr.mxu0 0.0
  %272 = vmatpush2.msra.mxu0 0.0
  %273 = vmatprep.subr.mxu0 0.0
  %274 = vmatpush2.msra.mxu0 0.0
  %275 = vmatprep.subr.mxu0 0.0
  %276 = vmatpush2.msra.mxu0 0.0
  %277 = vmatprep.subr.mxu0 0.0
  %278 = vmatpush2.msra.mxu0 0.0
  %279 = vmatprep.subr.mxu0 0.0
  %280 = vmatpush2.msra.mxu0 0.0
  %281 = vmatprep.subr.mxu0 0.0
  %282 = vmatpush2.msra.mxu0 0.0
  %283 = vmatprep.subr.mxu0 0.0
  %284 = vmatpush2.msra.mxu0 0.0
  %285 = vmatprep.mubr.f32.mxu0 0.0
  %286 = vmatmul.mubr.f32.gmra.mxu0 %v206
  %v287 = vpop.f32.mrf.mxu0
  %v288 = vadd.f32 %v202, %v287
  %v289 = vpop.f32.mrf.mxu0
  %290 = vmatprep.mubr.f32.mxu0 0.0
  %291 = vmatmul.mubr.f32.gmra.mxu0 %v209
  %v292 = vpop.f32.mrf.mxu0
  %v293 = vadd.f32 %v202, %v292
  %v294 = vpop.f32.mrf.mxu0
  %295 = vmatprep.mubr.f32.mxu0 0.0
  %296 = vmatmul.mubr.f32.gmra.mxu0 %v212
  %v297 = vpop.f32.mrf.mxu0
  %v298 = vadd.f32 %v202, %v297
  %v299 = vpop.f32.mrf.mxu0
  %300 = vmatprep.mubr.f32.mxu0 0.0
  %301 = vmatmul.mubr.f32.gmra.mxu0 %v215
  %v302 = vpop.f32.mrf.mxu0
  %v303 = vadd.f32 %v202, %v302
  %v304 = vpop.f32.mrf.mxu0
  %305 = vdwg.mxu0
  %v306 = vmax.f32 %v288, 0.0
  %v307 = vmax.f32 %v293, 0.0
  %v308 = vmax.f32 %v298, 0.0
  %v309 = vmax.f32 %v303, 0.0
  %310 = vst.msk [vmem:[%s3] sm:$0xff] %vm14, %v306
  %311 = vst.msk [vmem:[%s3 + $0x8] sm:$0xff] %vm14, %v307
  %s312 = scalar_lea.vmem %s3, 16
  %313 = vst.msk [vmem:[%s312] sm:$0xff] %vm14, %v308
  %314 = vst.msk [vmem:[%s312 + $0x8] sm:$0xff] %vm14, %v309
  // Predicated region
  $region14: #{tpu_custom_call.1} parent=0 // pred_check
    _
  $region15: #{tpu_custom_call.1} parent=0 // pred_check_branch
    %316 = sbr.rel (0) target = $region17
  $region16: #{tpu_custom_call.1} parent=0 // pred_region
    _
  $region17: #{tpu_custom_call.1} parent=0 // pred_fallthru
    _
  // Predicated region
  $region18: #{tpu_custom_call.1} parent=0 // pred_check
    _
  $region19: #{tpu_custom_call.1} parent=0 // pred_check_branch
    %318 = sbr.rel (0) target = $region21
  $region20: #{tpu_custom_call.1} parent=0 // pred_region
    _
  $region21: #{tpu_custom_call.1} parent=0 // pred_fallthru
    _

</llo_original>
